<compile_context>
chip_gen: v5e
topology: v5e:2x2
jax: 0.10.0
libtpu: 0.0.40
codegen_flags: <defaults>
</compile_context>

<pallas_src>
import jax
import jax.numpy as jnp
from jax.experimental import pallas as pl
from jax.experimental.pallas import tpu as pltpu


# -----------------------------------------------------------------------------
# Hardware-aware budgets & tile picking
# -----------------------------------------------------------------------------

_MXU_REP_MAX_E = 64  # above this the 0/1-rep MXU trick stops being "free" (v5e first)


def _vmem_limit_bytes() -> int:
    """Scoped-VMEM limit derived from the local chip's physical VMEM.

    v5e / v6e: 128 MiB physical -> 96 MiB limit (large writeback tiles).
    v7x:        64 MiB physical -> 48 MiB limit (headroom on the 2-TC part).
    Falls back to the conservative 48 MiB if the query is unavailable.
    """
    try:
        cap = int(pltpu.get_tpu_info().vmem_capacity_bytes)
    except Exception:
        cap = 64 * 1024 * 1024
    return min((cap * 3) // 4, 100 * 1024 * 1024)


def _tile_candidates(G: int):
    """Row-tile candidates: multiples of 8 dividing G (or G itself), descending."""
    if G < 8 or G % 8 != 0:
        return [G]
    return sorted({t for t in range(8, G + 1, 8) if G % t == 0}, reverse=True)


def _pick_flat_row_tile(G, E, itemsize, vmem_limit, batch):
    """Largest row tile for the flat path whose full resident set fits VMEM.

    Accounts for: output block (x2 double-buffer), emb rows block (x2),
    flattened table (x2), rep matrix (x2), and the f32 MXU result.
    Returns None if nothing fits (caller falls back to the 2-D path).
    """
    GE = G * E
    budget = int(vmem_limit * 0.7)
    fixed = 2 * (GE + E * GE) * itemsize                 # emb_flat + rep, double-buffered
    per_row = 2 * (GE + E) * itemsize + GE * 4           # out(x2) + emb rows(x2) + f32 i_term
    fitting = [t for t in _tile_candidates(G) if fixed + t * per_row <= budget]
    if not fitting:
        return None
    fitting = sorted(fitting, reverse=True)
    tile = fitting[0]
    # Guarantee >= 2 grid steps so "parallel" axes can shard across v7x's 2 TCs.
    if batch * (G // tile) < 2 and len(fitting) > 1:
        tile = fitting[1]
    return tile


def _pick_2d_tiles(G, E, itemsize, vmem_limit, batch):
    """Largest (TI, TJ) pair (prefer square-ish) fitting the VMEM budget."""
    budget = int(vmem_limit * 0.7)
    cands = _tile_candidates(G)
    best = None
    for ti in cands:
        for tj in cands:
            need = 2 * (ti * tj * E + ti * E + tj * E) * itemsize
            if need > budget:
                continue
            key = (ti * tj, -abs(ti - tj))
            if best is None or key > best[0]:
                best = (key, ti, tj)
    if best is None:
        # TODO(synk): split the E axis as well if a single (8, 8, E) block overflows VMEM.
        ti = tj = min(cands)
    else:
        _, ti, tj = best
    # Guarantee >= 2 grid steps for megacore sharding on v7x.
    if batch * (G // ti) * (G // tj) < 2 and len(cands) > 1:
        ti = cands[1]
    return ti, tj


# -----------------------------------------------------------------------------
# Kernels
# -----------------------------------------------------------------------------

def _abs_pe_flat_kernel(emb_rows_ref, emb_flat_ref, rep_ref, out_ref):
    """Lane-dense row tile of the (B, G, G*E) positional-sum slab.

    emb_rows_ref : (TI, E)    rows [i0, i0+TI) of the table  (i-term)
    emb_flat_ref : (1, G*E)   full table, row-major flatten  (j-term)
    rep_ref      : (E, G*E)   0/1 replication matrix, rep[k, j*E+k'] = (k == k')
    out_ref      : (1, TI, G*E)
    """
    # i-term: replicate each embedding row across the G lane groups on the
    # otherwise-idle MXU (exact: one 1.0 per output column).
    i_term = jnp.dot(emb_rows_ref[...], rep_ref[...],
                     preferred_element_type=jnp.float32)
    # j-term: sublane broadcast of the flattened table over the TI rows.
    out_ref[...] = (i_term + emb_flat_ref[...])[None].astype(out_ref.dtype)


def _abs_pe_2d_kernel(emb_i_ref, emb_j_ref, out_ref):
    """Direct broadcast-add tile (no rep matrix / MXU).

    emb_i_ref : (TI, E)            emb_j_ref : (TJ, E)
    out_ref   : (1, TI, TJ, E)     out[0, t, u, :] = emb_i[t] + emb_j[u]
    """
    s = emb_i_ref[...][:, None, :] + emb_j_ref[...][None, :, :]
    out_ref[...] = s[None].astype(out_ref.dtype)


# -----------------------------------------------------------------------------
# pallas_call wrappers
# -----------------------------------------------------------------------------

_REP_CACHE = {}


def _replication_matrix(E, G, dtype):
    """Cached (E, G*E) 0/1 tiling matrix, built in the embedding dtype."""
    key = (E, G, jnp.dtype(dtype).name)
    if key not in _REP_CACHE:
        _REP_CACHE[key] = jnp.tile(jnp.eye(E, dtype=dtype), (1, G))
    return _REP_CACHE[key]


def _abs_pe_flat_call(emb, b, row_tile, vmem_limit):
    G, E = emb.shape
    GE = G * E
    emb_flat = emb.reshape(1, GE)                     # free row-major reshape
    rep = _replication_matrix(E, G, emb.dtype)
    return pl.pallas_call(
        _abs_pe_flat_kernel,
        out_shape=jax.ShapeDtypeStruct((b, G, GE), emb.dtype),
        grid_spec=pltpu.PrefetchScalarGridSpec(
            num_scalar_prefetch=0,
            grid=(b, G // row_tile),
            in_specs=[
                pl.BlockSpec((row_tile, E), lambda bb, i: (i, 0)),   # i-term rows
                pl.BlockSpec((1, GE), lambda bb, i: (0, 0)),         # flat table
                pl.BlockSpec((E, GE), lambda bb, i: (0, 0)),         # rep matrix
            ],
            out_specs=pl.BlockSpec((1, row_tile, GE), lambda bb, i: (bb, i, 0)),
        ),
        compiler_params=pltpu.CompilerParams(
            dimension_semantics=("parallel", "parallel"),
            vmem_limit_bytes=vmem_limit,
        ),
    )(emb, emb_flat, rep)


def _abs_pe_2d_call(emb, b, ti, tj, vmem_limit):
    G, E = emb.shape
    return pl.pallas_call(
        _abs_pe_2d_kernel,
        out_shape=jax.ShapeDtypeStruct((b, G, G, E), emb.dtype),
        grid_spec=pltpu.PrefetchScalarGridSpec(
            num_scalar_prefetch=0,
            grid=(b, G // ti, G // tj),
            in_specs=[
                pl.BlockSpec((ti, E), lambda bb, i, j: (i, 0)),      # i-term rows
                pl.BlockSpec((tj, E), lambda bb, i, j: (j, 0)),      # j-term rows
            ],
            out_specs=pl.BlockSpec((1, ti, tj, E), lambda bb, i, j: (bb, i, j, 0)),
        ),
        compiler_params=pltpu.CompilerParams(
            dimension_semantics=("parallel", "parallel", "parallel"),
            vmem_limit_bytes=vmem_limit,
        ),
    )(emb, emb)


def base_abs_pe(emb: jax.Array, b: int) -> jax.Array:
    """emb: (grid_size, embedding_dim); returns (b, G, G, E) with
    out[bi, i, j, :] = emb[i] + emb[j]  (matches BaseAbsPE.forward)."""
    G, E = emb.shape
    GE = G * E
    itemsize = jnp.dtype(emb.dtype).itemsize
    vmem_limit = _vmem_limit_bytes()

    # Flat (MXU-replication) path only when E is small, the flattened output is
    # lane-dense, and the full resident set fits VMEM; otherwise direct 2-D path.
    if E <= _MXU_REP_MAX_E and GE % 128 == 0:
        row_tile = _pick_flat_row_tile(G, E, itemsize, vmem_limit, b)
        if row_tile is not None:
            slab = _abs_pe_flat_call(emb, b, row_tile, vmem_limit)  # (b, G, G*E)
            return slab.reshape(b, G, G, E)

    ti, tj = _pick_2d_tiles(G, E, itemsize, vmem_limit, b)
    return _abs_pe_2d_call(emb, b, ti, tj, vmem_limit)


def base_abs_pe_ref(emb: jax.Array, b: int) -> jax.Array:
    """Pure-JAX reference matching the PyTorch forward."""
    G, E = emb.shape
    grid2d = emb[:, None, :] + emb[None, :, :]           # (G, G, E)
    return jnp.broadcast_to(grid2d[None], (b, G, G, E))


if __name__ == "__main__":
    key = jax.random.PRNGKey(0)
    k1, k2 = jax.random.split(key)
    batch = 2

    # Path 1: small E -> lane-dense flattened slab via MXU replication.
    grid_size, embedding_dim = 8, 32
    emb1 = jax.random.normal(k1, (grid_size, embedding_dim), dtype=jnp.float32)
    out1 = jax.block_until_ready(base_abs_pe(emb1, batch))
    ref1 = base_abs_pe_ref(emb1, batch)
    assert out1.shape == (batch, grid_size, grid_size, embedding_dim)
    assert jnp.allclose(out1, ref1, atol=1e-6, rtol=1e-6)

    # Path 2: E % 128 == 0 -> direct broadcast-add (no rep matrix / MXU).
    grid_size2, embedding_dim2 = 16, 128
    emb2 = jax.random.normal(k2, (grid_size2, embedding_dim2), dtype=jnp.float32)
    out2 = jax.block_until_ready(base_abs_pe(emb2, batch))
    ref2 = base_abs_pe_ref(emb2, batch)
    assert out2.shape == (batch, grid_size2, grid_size2, embedding_dim2)
    assert jnp.allclose(out2, ref2, atol=1e-6, rtol=1e-6)

    print("KERNEL_OK")
</pallas_src>

<mosaic_0001>
module attributes {stable_mosaic.version = 11 : i64} {
  func.func @_abs_pe_flat_kernel(%arg0: i32, %arg1: i32, %arg2: memref<8x32xf32, #tpu.memory_space<vmem>>, %arg3: memref<1x256xf32, #tpu.memory_space<vmem>>, %arg4: memref<32x256xf32, #tpu.memory_space<vmem>>, %arg5: memref<1x8x256xf32, #tpu.memory_space<vmem>>) attributes {dimension_semantics = [#tpu.dimension_semantics<parallel>, #tpu.dimension_semantics<parallel>], iteration_bounds = array<i64: 2, 1>, scalar_prefetch = 0 : i64, scratch_operands = 0 : i64, tpu.core_type = #tpu.core_type<tc>, window_params = [{transform_indices = @transform_0, window_bounds = array<i64: 8, 32>}, {pipeline_mode = #tpu.pipeline_mode<synchronous>, transform_indices = @transform_1, window_bounds = array<i64: 1, 256>}, {pipeline_mode = #tpu.pipeline_mode<synchronous>, transform_indices = @transform_2, window_bounds = array<i64: 32, 256>}, {transform_indices = @transform_3, window_bounds = array<i64: 1, 8, 256>}]} {
    %c0 = arith.constant 0 : index
    %c0_0 = arith.constant 0 : index
    %0 = vector.load %arg2[%c0, %c0_0] : memref<8x32xf32, #tpu.memory_space<vmem>>, vector<8x32xf32>
    %c0_1 = arith.constant 0 : index
    %c0_2 = arith.constant 0 : index
    %1 = vector.load %arg4[%c0_1, %c0_2] : memref<32x256xf32, #tpu.memory_space<vmem>>, vector<32x256xf32>
    %cst = arith.constant dense<0.000000e+00> : vector<8x256xf32>
    %2 = tpu.matmul %0, %1, %cst {dimension_numbers = #tpu.dot_dimension_numbers<[1], [0], [0], [1], [0, 0, 1, 1], [], []>} : vector<8x32xf32>, vector<32x256xf32>, vector<8x256xf32> -> vector<8x256xf32>
    %c0_3 = arith.constant 0 : index
    %c0_4 = arith.constant 0 : index
    %3 = vector.load %arg3[%c0_3, %c0_4] : memref<1x256xf32, #tpu.memory_space<vmem>>, vector<1x256xf32>
    %4 = vector.broadcast %3 : vector<1x256xf32> to vector<8x256xf32>
    %5 = arith.addf %2, %4 : vector<8x256xf32>
    %6 = vector.shape_cast %5 : vector<8x256xf32> to vector<1x8x256xf32>
    %c0_5 = arith.constant 0 : index
    %c0_6 = arith.constant 0 : index
    %c0_7 = arith.constant 0 : index
    %7 = vector.load %arg5[%c0_5, %c0_6, %c0_7] : memref<1x8x256xf32, #tpu.memory_space<vmem>>, vector<1x8x256xf32>
    tpu.vector_store %arg5[%c0_5, %c0_6, %c0_7], %6 {strides = array<i32>} : memref<1x8x256xf32, #tpu.memory_space<vmem>>, vector<1x8x256xf32>,
    return
  }
  func.func @transform_0(%arg0: i32, %arg1: i32) -> (i32, i32) {
    %c0_i32 = arith.constant 0 : i32
    %c0_i32_0 = arith.constant 0 : i32
    return %arg1, %c0_i32 : i32, i32
  }
  func.func @transform_1(%arg0: i32, %arg1: i32) -> (i32, i32) {
    %c0_i32 = arith.constant 0 : i32
    %c0_i32_0 = arith.constant 0 : i32
    %c0_i32_1 = arith.constant 0 : i32
    return %c0_i32, %c0_i32_0 : i32, i32
  }
  func.func @transform_2(%arg0: i32, %arg1: i32) -> (i32, i32) {
    %c0_i32 = arith.constant 0 : i32
    %c0_i32_0 = arith.constant 0 : i32
    %c0_i32_1 = arith.constant 0 : i32
    return %c0_i32, %c0_i32_0 : i32, i32
  }
  func.func @transform_3(%arg0: i32, %arg1: i32) -> (i32, i32, i32) {
    %c0_i32 = arith.constant 0 : i32
    %c0_i32_0 = arith.constant 0 : i32
    return %arg0, %arg1, %c0_i32 : i32, i32, i32
  }
}

</mosaic_0001>

<llo_original>
// kernel: tpu_custom_call.1
$region0: #{tpu_custom_call.1}
  #allocation0 [shape = 'u32[]', space=smem, size = 0x4, offset = 0x4, fixed_abs, tag = 'smem constant byte address 0x4 - core index']
  #allocation1 [shape = 'u32[72,128]{1,0:T(1,128)}', space=vmem, size = 0x9000, scoped, tag = 'internal scratch']
  %s0 = inlined_call_operand.hbm [shape: f32[8,32], index: 0, kind: input, shape index: {}]
  %s1 = inlined_call_operand.hbm [shape: f32[1,256], index: 1, kind: input, shape index: {}]
  %s2 = inlined_call_operand.hbm [shape: f32[32,256], index: 2, kind: input, shape index: {}]
  %s3 = inlined_call_operand.hbm [shape: f32[2,8,256], index: 3, kind: output, shape index: {}]
  %s4 = sld [smem:[#allocation0]]
  $region57: #{tpu_custom_call.1} parent=0
    _
  %s6 = ssub.s32 1, %s4
  %s7 = scalar_select 0, %s6, %s4
  $region1: #{tpu_custom_call.1} parent=0
    #allocation2 [shape = 'u8[4096]{0}', space=vmem, size = 0x1000, scoped, tag = 'input window, operand 0, single buffered']
    #allocation3 [shape = 's32[2]{0}', space=sflag, size = 0x8, scoped, tag = 'scoped memory for tpu_custom_call.1']
    #allocation4 [shape = 's32[2]{0}', space=sflag, size = 0x8, scoped, tag = 'scoped memory for tpu_custom_call.1']
    #allocation5 [shape = 'u8[1024]{0}', space=vmem, size = 0x400, scoped, tag = 'input window, operand 1, single buffered']
    #allocation6 [shape = 's32[1]{0}', space=sflag, size = 0x4, scoped, tag = 'scoped memory for tpu_custom_call.1']
    #allocation7 [shape = 'u8[32768]{0}', space=vmem, size = 0x8000, scoped, tag = 'input window, operand 2, single buffered']
    #allocation8 [shape = 'u8[16384]{0}', space=vmem, size = 0x4000, scoped, tag = 'output window, operand 0']
    %8 = vsyncpa [#allocation3], 0
    %9 = vsyncpa [#allocation6], 0
    %10 = vsyncpa [#allocation4], 0
    %s11 = scalar_lea.sflag [#allocation4], 1
    %12 = vsyncpa %s11, 0
    loop: start=0, step=1, limit=4
    $region2: #{tpu_custom_call.1} parent=1 // loop_pre_header
      _
    $region3: #{tpu_custom_call.1} parent=1 // loop_header
      %s14 = sphi 0, %s18
      %p15 = scmp.ge.s32.totalorder %s14, 4
      %s21 = sphi 0, %s33
      %s22 = sphi 0, %s29
      %s23 = sphi 0, %s21
      %s24 = sphi 0, %s22
      %s25 = sphi 0, %s23
      %s26 = sphi 0, %s24
      %s36 = sphi 0, %s38
      %s39 = sphi 0, %s36
      %s40 = sphi 0, %s39
      %s56 = sphi 0, %s40
      %s60 = sphi 0, %s60
      %s62 = sphi 0, %s60
      %s63 = sphi 0, %s62
      %s77 = sphi 0, %s63
      %s81 = sphi 0, %s81
      %s83 = sphi 0, %s81
      %s84 = sphi 0, %s83
      %s98 = sphi 0, %s84
      %s106 = sphi 0, %s108
      %s109 = sphi 0, %s106
      %s110 = sphi 0, %s109
      %s126 = sphi 0, %s110
    $region4: #{tpu_custom_call.1} parent=1 // loop_header_branch
      %17 = sbr.rel (%p15) target = $region8
    $region5: #{tpu_custom_call.1} parent=1 // loop_body
      %s19 = ssub.s32 %s14, 1
      %s20 = ssub.s32 %s14, 2
      %s27 = sadd.s32 1, %s22
      %p28 = scmp.ge.s32.totalorder %s27, 1
      %s29 = scalar_select %p28, 0, %s27
      %s30 = sadd.s32 1, %s21
      %s31 = scalar_select %p28, %s30, %s21
      %p32 = scmp.ge.s32.totalorder %s31, 2
      %s33 = scalar_select %p32, 0, %s31
      %s34 = ssub.s32 %s22, %s29
      %p35 = scmp.eq.s32.totalorder %s34, 0
      %s37 = sadd.s32 %s36, 1
      %s38 = scalar_select %p35, %s36, %s37
      %p41 = pneg %p35
      %p42 = scmp.eq.s32.totalorder %s14, 1
      %p43 = por %p41, %p42
      %p44 = scmp.ne.s32.totalorder %s36, %s39
      %p45 = scmp.eq.s32.totalorder %s14, 0
      %p46 = por %p44, %p45
      %p47 = scmp.ne.s32.totalorder %s36, %s39
      %p48 = scmp.eq.s32.totalorder %s19, 1
      %p49 = por %p47, %p48
      %p50 = scmp.ne.s32.totalorder %s39, %s40
      %p51 = scmp.eq.s32.totalorder %s19, 0
      %p52 = por %p50, %p51
      %p53 = scmp.ne.s32.totalorder %s39, %s40
      %p54 = scmp.eq.s32.totalorder %s20, 1
      %p55 = por %p53, %p54
      %p57 = scmp.ne.s32.totalorder %s40, %s56
      %p58 = scmp.eq.s32.totalorder %s20, 0
      %p59 = por %p57, %p58
      %s61 = sadd.s32 %s60, 1
      %p64 = scmp.eq.s32.totalorder %s14, 1
      %p65 = scmp.ne.s32.totalorder %s60, %s62
      %p66 = scmp.eq.s32.totalorder %s14, 0
      %p67 = por %p65, %p66
      %p68 = scmp.ne.s32.totalorder %s60, %s62
      %p69 = scmp.eq.s32.totalorder %s19, 1
      %p70 = por %p68, %p69
      %p71 = scmp.ne.s32.totalorder %s62, %s63
      %p72 = scmp.eq.s32.totalorder %s19, 0
      %p73 = por %p71, %p72
      %p74 = scmp.ne.s32.totalorder %s62, %s63
      %p75 = scmp.eq.s32.totalorder %s20, 1
      %p76 = por %p74, %p75
      %p78 = scmp.ne.s32.totalorder %s63, %s77
      %p79 = scmp.eq.s32.totalorder %s20, 0
      %p80 = por %p78, %p79
      %s82 = sadd.s32 %s81, 1
      %p85 = scmp.eq.s32.totalorder %s14, 1
      %p86 = scmp.ne.s32.totalorder %s81, %s83
      %p87 = scmp.eq.s32.totalorder %s14, 0
      %p88 = por %p86, %p87
      %p89 = scmp.ne.s32.totalorder %s81, %s83
      %p90 = scmp.eq.s32.totalorder %s19, 1
      %p91 = por %p89, %p90
      %p92 = scmp.ne.s32.totalorder %s83, %s84
      %p93 = scmp.eq.s32.totalorder %s19, 0
      %p94 = por %p92, %p93
      %p95 = scmp.ne.s32.totalorder %s83, %s84
      %p96 = scmp.eq.s32.totalorder %s20, 1
      %p97 = por %p95, %p96
      %p99 = scmp.ne.s32.totalorder %s84, %s98
      %p100 = scmp.eq.s32.totalorder %s20, 0
      %p101 = por %p99, %p100
      %s102 = ssub.s32 %s21, %s33
      %s103 = ssub.s32 %s22, %s29
      %s104 = sor.u32 %s102, %s103
      %p105 = scmp.eq.s32.totalorder %s104, 0
      %s107 = sadd.s32 %s106, 1
      %s108 = scalar_select %p105, %s106, %s107
      %p111 = pneg %p105
      %p112 = scmp.eq.s32.totalorder %s14, 1
      %p113 = por %p111, %p112
      %p114 = scmp.ne.s32.totalorder %s106, %s109
      %p115 = scmp.eq.s32.totalorder %s14, 0
      %p116 = por %p114, %p115
      %p117 = scmp.ne.s32.totalorder %s106, %s109
      %p118 = scmp.eq.s32.totalorder %s19, 1
      %p119 = por %p117, %p118
      %p120 = scmp.ne.s32.totalorder %s109, %s110
      %p121 = scmp.eq.s32.totalorder %s19, 0
      %p122 = por %p120, %p121
      %p123 = scmp.ne.s32.totalorder %s109, %s110
      %p124 = scmp.eq.s32.totalorder %s20, 1
      %p125 = por %p123, %p124
      %p127 = scmp.ne.s32.totalorder %s110, %s126
      %p128 = scmp.eq.s32.totalorder %s20, 0
      %p129 = por %p127, %p128
      %p130 = scmp.le.s32.totalorder 1, %s14
      %p131 = scmp.lt.s32.totalorder %s14, 3
      %p132 = pnand %p130, %p131
      %p133 = pneg %p132
      // Predicated region
      $region9: #{tpu_custom_call.1} parent=5 // pred_check
        _
      $region10: #{tpu_custom_call.1} parent=5 // pred_check_branch
        %135 = sbr.rel (%p132) target = $region12
      $region11: #{tpu_custom_call.1} parent=5 // pred_region
        %s136 = ssub.s32 %s14, 1
        // Predicated region
        $region13: #{tpu_custom_call.1} parent=11 // pred_check
          %p137 = pneg %p52
        $region14: #{tpu_custom_call.1} parent=11 // pred_check_branch
          %139 = sbr.rel (%p137) target = $region16
        $region15: #{tpu_custom_call.1} parent=11 // pred_region
          %141 = vsyncadd [#allocation3], 0
          %s142 = smul.addr %s24, 8
          %s143 = scalar_lea.hbm %s0, %s142
          %s145 = sshll.u32 %s143, 4
          %s146 = int_to_ptr.hbm [resolvable:$true] %s145
          %s147 = sshll.u32 [#allocation2], 4
          %s148 = int_to_ptr.vmem [resolvable:$true] %s147
          %150 = dma.hbm_to_vmem [thread:$0]  %s146, 128, %s148, [#allocation3]
        $region16: #{tpu_custom_call.1} parent=11 // pred_fallthru
          _
        // Predicated region
        $region17: #{tpu_custom_call.1} parent=11 // pred_check
          %p151 = pneg %p73
        $region18: #{tpu_custom_call.1} parent=11 // pred_check_branch
          %153 = sbr.rel (%p151) target = $region20
        $region19: #{tpu_custom_call.1} parent=11 // pred_region
          %155 = vsyncadd [#allocation6], 0
          %s157 = sshll.u32 %s1, 4
          %s158 = int_to_ptr.hbm [resolvable:$true] %s157
          %s159 = sshll.u32 [#allocation5], 4
          %s160 = int_to_ptr.vmem [resolvable:$true] %s159
          %162 = dma.hbm_to_vmem [thread:$0]  %s158, 32, %s160, [#allocation6]
        $region20: #{tpu_custom_call.1} parent=11 // pred_fallthru
          _
        // Predicated region
        $region21: #{tpu_custom_call.1} parent=11 // pred_check
          %p163 = pneg %p94
        $region22: #{tpu_custom_call.1} parent=11 // pred_check_branch
          %165 = sbr.rel (%p163) target = $region24
        $region23: #{tpu_custom_call.1} parent=11 // pred_region
          %167 = vsyncadd [#allocation6], 0
          %s168 = sshll.u32 %s2, 4
          %s169 = int_to_ptr.hbm [resolvable:$true] %s168
          %s170 = sshll.u32 [#allocation7], 4
          %s171 = int_to_ptr.vmem [resolvable:$true] %s170
          %176 = dma.hbm_to_vmem [thread:$0]  %s169, 1024, %s171, [#allocation6], 256, 256, 16
        $region24: #{tpu_custom_call.1} parent=11 // pred_fallthru
          _
      $region12: #{tpu_custom_call.1} parent=5 // pred_fallthru
        _
      %p177 = scmp.lt.s32.totalorder %s14, 2
      // Predicated region
      $region25: #{tpu_custom_call.1} parent=5 // pred_check
        %p178 = pneg %p177
      $region26: #{tpu_custom_call.1} parent=5 // pred_check_branch
        %180 = sbr.rel (%p178) target = $region28
      $region27: #{tpu_custom_call.1} parent=5 // pred_region
        _
      $region28: #{tpu_custom_call.1} parent=5 // pred_fallthru
        _
      %p181 = scmp.le.s32.totalorder 1, %s14
      %p182 = scmp.lt.s32.totalorder %s14, 3
      %p183 = pnand %p181, %p182
      %p184 = pneg %p183
      // Predicated region
      $region29: #{tpu_custom_call.1} parent=5 // pred_check
        _
      $region30: #{tpu_custom_call.1} parent=5 // pred_check_branch
        %186 = sbr.rel (%p183) target = $region32
      $region31: #{tpu_custom_call.1} parent=5 // pred_region
        %s187 = ssub.s32 %s14, 1
        // Predicated region
        $region33: #{tpu_custom_call.1} parent=31 // pred_check
          %p188 = pneg %p52
        $region34: #{tpu_custom_call.1} parent=31 // pred_check_branch
          %190 = sbr.rel (%p188) target = $region36
        $region35: #{tpu_custom_call.1} parent=31 // pred_region
          %192 = dma.done [#allocation3], 128
        $region36: #{tpu_custom_call.1} parent=31 // pred_fallthru
          _
        // Predicated region
        $region37: #{tpu_custom_call.1} parent=31 // pred_check
          %p193 = pneg %p73
        $region38: #{tpu_custom_call.1} parent=31 // pred_check_branch
          %195 = sbr.rel (%p193) target = $region40
        $region39: #{tpu_custom_call.1} parent=31 // pred_region
          %197 = dma.done [#allocation6], 32
        $region40: #{tpu_custom_call.1} parent=31 // pred_fallthru
          _
        // Predicated region
        $region41: #{tpu_custom_call.1} parent=31 // pred_check
          %p198 = pneg %p94
        $region42: #{tpu_custom_call.1} parent=31 // pred_check_branch
          %200 = sbr.rel (%p198) target = $region44
        $region43: #{tpu_custom_call.1} parent=31 // pred_region
          %202 = dma.done [#allocation6], 1024
        $region44: #{tpu_custom_call.1} parent=31 // pred_fallthru
          _
        %p203 = pneg %p52
        %p204 = pneg %p49
        %p205 = pneg %p73
        %p206 = pneg %p70
        %p207 = pneg %p94
        %p208 = pneg %p91
        %p209 = pneg %p122
        %p210 = pneg %p119
        %s211 = sand.u32 %s109, 1
        %s212 = scalar_lea.sflag [#allocation4], %s211
        %s213 = sand.u32 %s109, 1
        %s214 = smul.addr %s213, 16
        %s215 = scalar_lea.vmem [#allocation8], %s214
        %v216 = vld [vmem:[#allocation2] sm:$0xff]
        %v217 = vld [vmem:[#allocation7] sm:$0xff]
        %v218 = vld [vmem:[#allocation7 + $0x8] sm:$0xff]
        %v219 = vld [vmem:[#allocation7 + $0x10] sm:$0xff]
        %v220 = vld [vmem:[#allocation7 + $0x18] sm:$0xff]
        %v221 = vld [vmem:[#allocation7 + $0x20] sm:$0xff]
        %v222 = vld [vmem:[#allocation7 + $0x28] sm:$0xff]
        %v223 = vld [vmem:[#allocation7 + $0x30] sm:$0xff]
        %v224 = vld [vmem:[#allocation7 + $0x38] sm:$0xff]
        %v225 = vld [vmem:[#allocation5] sm:$0x3]
        %v227 = vperm.slane %v225, 0
        %v228 = vperm.slane %v225, 1
        %vm231 = vcmask 261120
        %v233 = vsel %vm231, %v216, 0
        %235 = vmatpush.msra.mxu0 0.0
        %236 = vmatpush.msra.mxu0 0.0
        %237 = vmatpush.msra.mxu0 0.0
        %238 = vmatpush.msra.mxu0 0.0
        %239 = vmatpush.msra.mxu0 0.0
        %240 = vmatpush.msra.mxu0 0.0
        %241 = vmatpush.msra.mxu0 0.0
        %242 = vmatpush.msra.mxu0 0.0
        %243 = vmatpush.msra.mxu0 0.0
        %244 = vmatpush.msra.mxu0 0.0
        %245 = vmatpush.msra.mxu0 0.0
        %246 = vmatpush.msra.mxu0 0.0
        %247 = vmatpush.msra.mxu0 %v223
        %248 = vmatpush.msra.mxu0 %v221
        %249 = vmatpush.msra.mxu0 %v219
        %250 = vmatpush.msra.mxu0 %v217
        %251 = vmatmul.f32.gmra.mxu0 %v233
        %v252 = vpop.f32.mrf.mxu0
        %v253 = vadd.f32 %v227, %v252
        %254 = vdwg.mxu0
        %255 = vmatpush.msra.mxu0 0.0
        %256 = vmatpush.msra.mxu0 0.0
        %257 = vmatpush.msra.mxu0 0.0
        %258 = vmatpush.msra.mxu0 0.0
        %259 = vmatpush.msra.mxu0 0.0
        %260 = vmatpush.msra.mxu0 0.0
        %261 = vmatpush.msra.mxu0 0.0
        %262 = vmatpush.msra.mxu0 0.0
        %263 = vmatpush.msra.mxu0 0.0
        %264 = vmatpush.msra.mxu0 0.0
        %265 = vmatpush.msra.mxu0 0.0
        %266 = vmatpush.msra.mxu0 0.0
        %267 = vmatpush.msra.mxu0 %v224
        %268 = vmatpush.msra.mxu0 %v222
        %269 = vmatpush.msra.mxu0 %v220
        %270 = vmatpush.msra.mxu0 %v218
        %271 = vmatmul.f32.gmra.mxu0 %v233
        %v272 = vpop.f32.mrf.mxu0
        %v273 = vadd.f32 %v228, %v272
        %274 = vdwg.mxu0
        %275 = vst [vmem:[%s215] sm:$0xff] %v253
        %276 = vst [vmem:[%s215 + $0x8] sm:$0xff] %v273
        %s277 = sand.u32 %s109, 1
        %s278 = scalar_lea.sflag [#allocation4], %s277
        %s279 = sand.u32 %s109, 1
        %s280 = smul.addr %s279, 16
        %s281 = scalar_lea.vmem [#allocation8], %s280
        // Predicated region
        $region45: #{tpu_custom_call.1} parent=31 // pred_check
          %p282 = pneg %p119
        $region46: #{tpu_custom_call.1} parent=31 // pred_check_branch
          %284 = sbr.rel (%p282) target = $region48
        $region47: #{tpu_custom_call.1} parent=31 // pred_region
          %286 = vsyncadd %s278, 0
          %s287 = smul.addr %s24, 2
          %s288 = smul.addr %s23, 2
          %s289 = sadd.s32 %s287, %s288
          %s290 = smul.addr %s289, 8
          %s291 = scalar_lea.hbm %s3, %s290
          %s293 = sshll.u32 %s281, 4
          %s294 = int_to_ptr.vmem [resolvable:$true] %s293
          %s295 = sshll.u32 %s291, 4
          %s296 = int_to_ptr.hbm [resolvable:$true] %s295
          %298 = dma.vmem_to_hbm [thread:$0]  %s294, 256, %s296, %s278
        $region48: #{tpu_custom_call.1} parent=31 // pred_fallthru
          _
      $region32: #{tpu_custom_call.1} parent=5 // pred_fallthru
        _
      %p299 = scmp.le.s32.totalorder 2, %s14
      // Predicated region
      $region49: #{tpu_custom_call.1} parent=5 // pred_check
        %p300 = pneg %p299
      $region50: #{tpu_custom_call.1} parent=5 // pred_check_branch
        %302 = sbr.rel (%p300) target = $region52
      $region51: #{tpu_custom_call.1} parent=5 // pred_region
        %s303 = ssub.s32 %s14, 2
        // Predicated region
        $region53: #{tpu_custom_call.1} parent=51 // pred_check
          %p304 = pneg %p125
        $region54: #{tpu_custom_call.1} parent=51 // pred_check_branch
          %306 = sbr.rel (%p304) target = $region56
        $region55: #{tpu_custom_call.1} parent=51 // pred_region
          %s307 = sand.u32 %s110, 1
          %s308 = scalar_lea.sflag [#allocation4], %s307
          %s309 = sand.u32 %s110, 1
          %s310 = smul.addr %s309, 16
          %s311 = scalar_lea.vmem [#allocation8], %s310
          %313 = dma.done %s308, 256
        $region56: #{tpu_custom_call.1} parent=51 // pred_fallthru
          _
      $region52: #{tpu_custom_call.1} parent=5 // pred_fallthru
        _
    $region6: #{tpu_custom_call.1} parent=1 // loop_footer
      %s18 = sadd.s32 1, %s14
    $region7: #{tpu_custom_call.1} parent=1 // loop_footer_branch
      %13 = sbr.rel target = $region3
    $region8: #{tpu_custom_call.1} parent=1 // loop_exit
      _
    %314 = vsyncpa [#allocation3], 1
    %s315 = scalar_lea.sflag [#allocation3], 1
    %316 = vsyncpa %s315, 1
    %317 = vsyncpa [#allocation6], 1
    %318 = vsyncpa [#allocation4], 1
    %s319 = scalar_lea.sflag [#allocation4], 1
    %320 = vsyncpa %s319, 1

</llo_original>
